<compile_context>
chip_gen: v7x
topology: tpu7x:2x2x1
jax: 0.10.0
libtpu: 0.0.40
codegen_flags: <defaults>
</compile_context>

<pallas_src>
import jax
import jax.numpy as jnp
from jax.experimental import pallas as pl
from jax.experimental.pallas import tpu as pltpu


def _round_up(n, m):
    return ((n + m - 1) // m) * m


def _mlp_kernel(h_ref, x_ref,
                w1_ref, b1_ref, w2_ref, b2_ref,
                w3h_ref, w3e_ref, b3_ref, w4t_ref, b4_ref,
                out_ref):
    # h_ref: (TM, nf) f32     node features
    # x_ref: (TM, 21) f32     ij features
    # w1:  (21, 128) bf16     w2: (128, 128) bf16
    # w3h: (nf, nf+128) bf16  w3e: (128, nf+128) bf16
    # w4t: (1, nf+128) f32    (final head, kept f32)
    # biases are f32.
    hb = h_ref[...].astype(jnp.bfloat16)
    xb = x_ref[...].astype(jnp.bfloat16)

    # ij embedding: Linear(21,128) -> ReLU -> Linear(128,128)
    h1 = jnp.dot(xb, w1_ref[...], preferred_element_type=jnp.float32) + b1_ref[...]
    h1 = jnp.maximum(h1, 0.0)
    ij = jnp.dot(h1.astype(jnp.bfloat16), w2_ref[...],
                 preferred_element_type=jnp.float32) + b2_ref[...]

    # concat([h, ij]) @ W3 == h @ W3[:nf] + ij @ W3[nf:]
    z = (jnp.dot(hb, w3h_ref[...], preferred_element_type=jnp.float32)
         + jnp.dot(ij.astype(jnp.bfloat16), w3e_ref[...],
                   preferred_element_type=jnp.float32)
         + b3_ref[...])
    z = jnp.maximum(z, 0.0)

    # Final Linear(nf+128, 1) in f32: z @ w4 == sum(z * w4^T, axis=-1).
    out = jnp.sum(z * w4t_ref[...], axis=-1, keepdims=True) + b4_ref[...]
    out_ref[...] = out.astype(out_ref.dtype)


def mlp_reg_forward(h, x, params, *, tm=None):
    """h: (..., nf) node features, x: (..., 21) ij features -> (..., 1)."""
    nf = h.shape[-1]
    lead = h.shape[:-1]
    M = 1
    for d in lead:
        M *= d
    h2 = h.reshape(M, nf).astype(jnp.float32)
    x2 = x.reshape(M, 21).astype(jnp.float32)

    w1, b1, w2, b2, w3h, w3e, b3, w4, b4 = params
    out_dim = w4.shape[1]
    assert out_dim == 1, "MLPReg head is out_dim=1"

    # bf16 MXU operands; biases and the final head stay f32.
    w1b = w1.astype(jnp.bfloat16)
    w2b = w2.astype(jnp.bfloat16)
    w3hb = w3h.astype(jnp.bfloat16)
    w3eb = w3e.astype(jnp.bfloat16)
    w4t = w4.T.astype(jnp.float32)          # (1, nf+128)
    b1f = b1.astype(jnp.float32)
    b2f = b2.astype(jnp.float32)
    b3f = b3.astype(jnp.float32)
    b4f = b4.astype(jnp.float32)            # (1, 1)

    # Row tile: big enough to amortize per-step overhead, small enough that
    # double-buffered input + f32 intermediates stay well under the scoped VMEM
    # budget on every generation, and >= 2 grid steps so v7x can use both TCs.
    if tm is None:
        tm = max(8, min(2048, _round_up(pl.cdiv(M, 2), 8)))
    grid = (pl.cdiv(M, tm),)   # ragged edge block handled by Pallas (no jnp.pad)

    def full_spec(a):
        nd = a.ndim
        return pl.BlockSpec(a.shape, lambda i, _nd=nd: (0,) * _nd)

    out = pl.pallas_call(
        _mlp_kernel,
        out_shape=jax.ShapeDtypeStruct((M, out_dim), jnp.float32),
        grid_spec=pltpu.PrefetchScalarGridSpec(
            num_scalar_prefetch=0,
            grid=grid,
            in_specs=[
                pl.BlockSpec((tm, nf), lambda i: (i, 0)),   # h rows
                pl.BlockSpec((tm, 21), lambda i: (i, 0)),   # x rows
                full_spec(w1b), full_spec(b1f),
                full_spec(w2b), full_spec(b2f),
                full_spec(w3hb), full_spec(w3eb), full_spec(b3f),
                full_spec(w4t), full_spec(b4f),
            ],
            # True 1-column output (tiny writeback DMA; no padded lanes in HBM).
            out_specs=pl.BlockSpec((tm, out_dim), lambda i: (i, 0)),
        ),
        compiler_params=pltpu.CompilerParams(
            dimension_semantics=("parallel",),
            vmem_limit_bytes=32 * 1024 * 1024),
    )(h2, x2, w1b, b1f, w2b, b2f, w3hb, w3eb, b3f, w4t, b4f)

    return out.reshape(*lead, out_dim)


def init_params(key, num_channels, num_degrees=4, dim=128, out_dim=1):
    """PyTorch-style Linear init: uniform(-1/sqrt(fan_in), +1/sqrt(fan_in))."""
    nf = num_degrees * num_channels        # Fiber(1, num_degrees*num_channels).n_features
    hid = nf + dim

    def linear(key, fan_in, fan_out):
        kw, kb = jax.random.split(key)
        bound = 1.0 / jnp.sqrt(jnp.float32(fan_in))
        w = jax.random.uniform(kw, (fan_in, fan_out), jnp.float32, -bound, bound)
        b = jax.random.uniform(kb, (1, fan_out), jnp.float32, -bound, bound)
        return w, b

    k1, k2, k3, k4 = jax.random.split(key, 4)
    w1, b1 = linear(k1, 21, dim)           # emb[0]
    w2, b2 = linear(k2, dim, dim)          # emb[2]
    w3, b3 = linear(k3, hid, hid)          # mlp[0]
    w4, b4 = linear(k4, hid, out_dim)      # mlp[2]

    # Split W3 so the runtime concat is removed: cat([h, ij]) @ W3 = h@W3[:nf] + ij@W3[nf:]
    w3h, w3e = w3[:nf], w3[nf:]
    return nf, (w1, b1, w2, b2, w3h, w3e, b3, w4, b4)


def reference_forward(h, x, params):
    """Pure-JAX f32 reference of MLPReg.forward(h, x)."""
    w1, b1, w2, b2, w3h, w3e, b3, w4, b4 = params
    ij = jnp.maximum(x @ w1 + b1, 0.0) @ w2 + b2
    z = jnp.concatenate([h, ij], axis=-1)
    w3 = jnp.concatenate([w3h, w3e], axis=0)
    zz = jnp.maximum(z @ w3 + b3, 0.0)
    return zz @ w4 + b4


if __name__ == "__main__":
    num_channels, num_degrees = 4, 4       # nf = 16
    batch, seq = 2, 8

    key = jax.random.PRNGKey(0)
    kp, kh, kx = jax.random.split(key, 3)
    nf, params = init_params(kp, num_channels, num_degrees)

    h = jax.random.normal(kh, (batch, seq, nf), jnp.float32)      # node features
    x = jax.random.normal(kx, (batch, seq, 21), jnp.float32)      # ij features

    out = mlp_reg_forward(h, x, params)
    out = jax.block_until_ready(out)

    ref = reference_forward(h, x, params)
    assert out.shape == (batch, seq, 1), out.shape
    # bf16 MXU inputs (f32 accumulation, f32 final head) vs f32 reference.
    assert jnp.allclose(out, ref, atol=3e-2, rtol=3e-2), "mismatch vs reference"

    print("KERNEL_OK")
</pallas_src>

<mosaic_0001>
module attributes {stable_mosaic.version = 11 : i64} {
  func.func @_mlp_kernel(%arg0: i32, %arg1: memref<8x16xf32, #tpu.memory_space<vmem>>, %arg2: memref<8x21xf32, #tpu.memory_space<vmem>>, %arg3: memref<21x128xbf16, #tpu.memory_space<vmem>>, %arg4: memref<1x128xf32, #tpu.memory_space<vmem>>, %arg5: memref<128x128xbf16, #tpu.memory_space<vmem>>, %arg6: memref<1x128xf32, #tpu.memory_space<vmem>>, %arg7: memref<16x144xbf16, #tpu.memory_space<vmem>>, %arg8: memref<128x144xbf16, #tpu.memory_space<vmem>>, %arg9: memref<1x144xf32, #tpu.memory_space<vmem>>, %arg10: memref<1x144xf32, #tpu.memory_space<vmem>>, %arg11: memref<1x1xf32, #tpu.memory_space<vmem>>, %arg12: memref<8x1xf32, #tpu.memory_space<vmem>>) attributes {dimension_semantics = [#tpu.dimension_semantics<parallel>], iteration_bounds = array<i64: 2>, scalar_prefetch = 0 : i64, scratch_operands = 0 : i64, tpu.core_type = #tpu.core_type<tc>, window_params = [{transform_indices = @transform_0, window_bounds = array<i64: 8, 16>}, {transform_indices = @transform_1, window_bounds = array<i64: 8, 21>}, {pipeline_mode = #tpu.pipeline_mode<synchronous>, transform_indices = @transform_2, window_bounds = array<i64: 21, 128>}, {pipeline_mode = #tpu.pipeline_mode<synchronous>, transform_indices = @transform_3, window_bounds = array<i64: 1, 128>}, {pipeline_mode = #tpu.pipeline_mode<synchronous>, transform_indices = @transform_4, window_bounds = array<i64: 128, 128>}, {pipeline_mode = #tpu.pipeline_mode<synchronous>, transform_indices = @transform_5, window_bounds = array<i64: 1, 128>}, {pipeline_mode = #tpu.pipeline_mode<synchronous>, transform_indices = @transform_6, window_bounds = array<i64: 16, 144>}, {pipeline_mode = #tpu.pipeline_mode<synchronous>, transform_indices = @transform_7, window_bounds = array<i64: 128, 144>}, {pipeline_mode = #tpu.pipeline_mode<synchronous>, transform_indices = @transform_8, window_bounds = array<i64: 1, 144>}, {pipeline_mode = #tpu.pipeline_mode<synchronous>, transform_indices = @transform_9, window_bounds = array<i64: 1, 144>}, {pipeline_mode = #tpu.pipeline_mode<synchronous>, transform_indices = @transform_10, window_bounds = array<i64: 1, 1>}, {transform_indices = @transform_11, window_bounds = array<i64: 8, 1>}]} {
    %c0 = arith.constant 0 : index
    %c0_0 = arith.constant 0 : index
    %0 = vector.load %arg1[%c0, %c0_0] : memref<8x16xf32, #tpu.memory_space<vmem>>, vector<8x16xf32>
    %1 = arith.truncf %0 : vector<8x16xf32> to vector<8x16xbf16>
    %c0_1 = arith.constant 0 : index
    %c0_2 = arith.constant 0 : index
    %2 = vector.load %arg2[%c0_1, %c0_2] : memref<8x21xf32, #tpu.memory_space<vmem>>, vector<8x21xf32>
    %3 = arith.truncf %2 : vector<8x21xf32> to vector<8x21xbf16>
    %c0_3 = arith.constant 0 : index
    %c0_4 = arith.constant 0 : index
    %4 = vector.load %arg3[%c0_3, %c0_4] : memref<21x128xbf16, #tpu.memory_space<vmem>>, vector<21x128xbf16>
    %cst = arith.constant dense<0.000000e+00> : vector<8x128xf32>
    %5 = tpu.matmul %3, %4, %cst {dimension_numbers = #tpu.dot_dimension_numbers<[1], [0], [0], [1], [0, 0, 1, 1], [], []>} : vector<8x21xbf16>, vector<21x128xbf16>, vector<8x128xf32> -> vector<8x128xf32>
    %c0_5 = arith.constant 0 : index
    %c0_6 = arith.constant 0 : index
    %6 = vector.load %arg4[%c0_5, %c0_6] : memref<1x128xf32, #tpu.memory_space<vmem>>, vector<1x128xf32>
    %7 = vector.broadcast %6 : vector<1x128xf32> to vector<8x128xf32>
    %8 = arith.addf %5, %7 : vector<8x128xf32>
    %cst_7 = arith.constant 0.000000e+00 : f32
    %9 = vector.broadcast %cst_7 : f32 to vector<8x128xf32>
    %10 = arith.maximumf %8, %9 : vector<8x128xf32>
    %11 = arith.truncf %10 : vector<8x128xf32> to vector<8x128xbf16>
    %c0_8 = arith.constant 0 : index
    %c0_9 = arith.constant 0 : index
    %12 = vector.load %arg5[%c0_8, %c0_9] : memref<128x128xbf16, #tpu.memory_space<vmem>>, vector<128x128xbf16>
    %cst_10 = arith.constant dense<0.000000e+00> : vector<8x128xf32>
    %13 = tpu.matmul %11, %12, %cst_10 {dimension_numbers = #tpu.dot_dimension_numbers<[1], [0], [0], [1], [0, 0, 1, 1], [], []>} : vector<8x128xbf16>, vector<128x128xbf16>, vector<8x128xf32> -> vector<8x128xf32>
    %c0_11 = arith.constant 0 : index
    %c0_12 = arith.constant 0 : index
    %14 = vector.load %arg6[%c0_11, %c0_12] : memref<1x128xf32, #tpu.memory_space<vmem>>, vector<1x128xf32>
    %15 = vector.broadcast %14 : vector<1x128xf32> to vector<8x128xf32>
    %16 = arith.addf %13, %15 : vector<8x128xf32>
    %c0_13 = arith.constant 0 : index
    %c0_14 = arith.constant 0 : index
    %17 = vector.load %arg7[%c0_13, %c0_14] : memref<16x144xbf16, #tpu.memory_space<vmem>>, vector<16x144xbf16>
    %cst_15 = arith.constant dense<0.000000e+00> : vector<8x144xf32>
    %18 = tpu.matmul %1, %17, %cst_15 {dimension_numbers = #tpu.dot_dimension_numbers<[1], [0], [0], [1], [0, 0, 1, 1], [], []>} : vector<8x16xbf16>, vector<16x144xbf16>, vector<8x144xf32> -> vector<8x144xf32>
    %19 = arith.truncf %16 : vector<8x128xf32> to vector<8x128xbf16>
    %c0_16 = arith.constant 0 : index
    %c0_17 = arith.constant 0 : index
    %20 = vector.load %arg8[%c0_16, %c0_17] : memref<128x144xbf16, #tpu.memory_space<vmem>>, vector<128x144xbf16>
    %cst_18 = arith.constant dense<0.000000e+00> : vector<8x144xf32>
    %21 = tpu.matmul %19, %20, %cst_18 {dimension_numbers = #tpu.dot_dimension_numbers<[1], [0], [0], [1], [0, 0, 1, 1], [], []>} : vector<8x128xbf16>, vector<128x144xbf16>, vector<8x144xf32> -> vector<8x144xf32>
    %22 = arith.addf %18, %21 : vector<8x144xf32>
    %c0_19 = arith.constant 0 : index
    %c0_20 = arith.constant 0 : index
    %23 = vector.load %arg9[%c0_19, %c0_20] : memref<1x144xf32, #tpu.memory_space<vmem>>, vector<1x144xf32>
    %24 = vector.broadcast %23 : vector<1x144xf32> to vector<8x144xf32>
    %25 = arith.addf %22, %24 : vector<8x144xf32>
    %cst_21 = arith.constant 0.000000e+00 : f32
    %26 = vector.broadcast %cst_21 : f32 to vector<8x144xf32>
    %27 = arith.maximumf %25, %26 : vector<8x144xf32>
    %c0_22 = arith.constant 0 : index
    %c0_23 = arith.constant 0 : index
    %28 = vector.load %arg10[%c0_22, %c0_23] : memref<1x144xf32, #tpu.memory_space<vmem>>, vector<1x144xf32>
    %29 = vector.broadcast %28 : vector<1x144xf32> to vector<8x144xf32>
    %30 = arith.mulf %27, %29 : vector<8x144xf32>
    %cst_24 = arith.constant dense<0.000000e+00> : vector<8xf32>
    %31 = vector.multi_reduction <add>, %30, %cst_24 [1] : vector<8x144xf32> to vector<8xf32>
    %32 = vector.shape_cast %31 : vector<8xf32> to vector<8x1xf32>
    %c0_25 = arith.constant 0 : index
    %c0_26 = arith.constant 0 : index
    %33 = vector.load %arg11[%c0_25, %c0_26] : memref<1x1xf32, #tpu.memory_space<vmem>>, vector<1x1xf32>
    %34 = vector.broadcast %33 : vector<1x1xf32> to vector<8x1xf32>
    %35 = arith.addf %32, %34 : vector<8x1xf32>
    %c0_27 = arith.constant 0 : index
    %c0_28 = arith.constant 0 : index
    %36 = vector.load %arg12[%c0_27, %c0_28] : memref<8x1xf32, #tpu.memory_space<vmem>>, vector<8x1xf32>
    tpu.vector_store %arg12[%c0_27, %c0_28], %35 {strides = array<i32>} : memref<8x1xf32, #tpu.memory_space<vmem>>, vector<8x1xf32>,
    return
  }
  func.func @transform_0(%arg0: i32) -> (i32, i32) {
    %c0_i32 = arith.constant 0 : i32
    %c0_i32_0 = arith.constant 0 : i32
    return %arg0, %c0_i32 : i32, i32
  }
  func.func @transform_1(%arg0: i32) -> (i32, i32) {
    %c0_i32 = arith.constant 0 : i32
    %c0_i32_0 = arith.constant 0 : i32
    return %arg0, %c0_i32 : i32, i32
  }
  func.func @transform_2(%arg0: i32) -> (i32, i32) {
    %c0_i32 = arith.constant 0 : i32
    %c0_i32_0 = arith.constant 0 : i32
    %c0_i32_1 = arith.constant 0 : i32
    return %c0_i32, %c0_i32_0 : i32, i32
  }
  func.func @transform_3(%arg0: i32) -> (i32, i32) {
    %c0_i32 = arith.constant 0 : i32
    %c0_i32_0 = arith.constant 0 : i32
    %c0_i32_1 = arith.constant 0 : i32
    return %c0_i32, %c0_i32_0 : i32, i32
  }
  func.func @transform_4(%arg0: i32) -> (i32, i32) {
    %c0_i32 = arith.constant 0 : i32
    %c0_i32_0 = arith.constant 0 : i32
    %c0_i32_1 = arith.constant 0 : i32
    return %c0_i32, %c0_i32_0 : i32, i32
  }
  func.func @transform_5(%arg0: i32) -> (i32, i32) {
    %c0_i32 = arith.constant 0 : i32
    %c0_i32_0 = arith.constant 0 : i32
    %c0_i32_1 = arith.constant 0 : i32
    return %c0_i32, %c0_i32_0 : i32, i32
  }
  func.func @transform_6(%arg0: i32) -> (i32, i32) {
    %c0_i32 = arith.constant 0 : i32
    %c0_i32_0 = arith.constant 0 : i32
    %c0_i32_1 = arith.constant 0 : i32
    return %c0_i32, %c0_i32_0 : i32, i32
  }
  func.func @transform_7(%arg0: i32) -> (i32, i32) {
    %c0_i32 = arith.constant 0 : i32
    %c0_i32_0 = arith.constant 0 : i32
    %c0_i32_1 = arith.constant 0 : i32
    return %c0_i32, %c0_i32_0 : i32, i32
  }
  func.func @transform_8(%arg0: i32) -> (i32, i32) {
    %c0_i32 = arith.constant 0 : i32
    %c0_i32_0 = arith.constant 0 : i32
    %c0_i32_1 = arith.constant 0 : i32
    return %c0_i32, %c0_i32_0 : i32, i32
  }
  func.func @transform_9(%arg0: i32) -> (i32, i32) {
    %c0_i32 = arith.constant 0 : i32
    %c0_i32_0 = arith.constant 0 : i32
    %c0_i32_1 = arith.constant 0 : i32
    return %c0_i32, %c0_i32_0 : i32, i32
  }
  func.func @transform_10(%arg0: i32) -> (i32, i32) {
    %c0_i32 = arith.constant 0 : i32
    %c0_i32_0 = arith.constant 0 : i32
    %c0_i32_1 = arith.constant 0 : i32
    return %c0_i32, %c0_i32_0 : i32, i32
  }
  func.func @transform_11(%arg0: i32) -> (i32, i32) {
    %c0_i32 = arith.constant 0 : i32
    %c0_i32_0 = arith.constant 0 : i32
    return %arg0, %c0_i32 : i32, i32
  }
}

</mosaic_0001>

<llo_original>
// kernel: tpu_custom_call.1
$region0: #{tpu_custom_call.1}
  #allocation0 [shape = 'u32[]', space=smem, size = 0x4, offset = 0x4, fixed_abs, tag = 'smem constant byte address 0x4 - core index']
  #allocation1 [shape = 'u32[144,128]{1,0:T(1,128)}', space=vmem, size = 0x12000, scoped, tag = 'internal scratch']
  #allocation2 [shape = 'f32[1,1]{1,0:T(1,128)S(1)}', space=vmem, size = 0x200, scoped, tag = 'scoped memory for tpu_custom_call.1']
  %s0 = inlined_call_operand.vmem [shape: f32[16,16], index: 0, kind: input, shape index: {}]
  %s1 = inlined_call_operand.vmem [shape: f32[16,21], index: 1, kind: input, shape index: {}]
  %s2 = inlined_call_operand.vmem [shape: bf16[21,128], index: 2, kind: input, shape index: {}]
  %s3 = inlined_call_operand.vmem [shape: f32[1,128], index: 3, kind: input, shape index: {}]
  %s4 = inlined_call_operand.vmem [shape: bf16[128,128], index: 4, kind: input, shape index: {}]
  %s5 = inlined_call_operand.vmem [shape: f32[1,128], index: 5, kind: input, shape index: {}]
  %s6 = inlined_call_operand.vmem [shape: bf16[16,144], index: 6, kind: input, shape index: {}]
  %s7 = inlined_call_operand.vmem [shape: bf16[128,144], index: 7, kind: input, shape index: {}]
  %s8 = inlined_call_operand.vmem [shape: f32[1,144], index: 8, kind: input, shape index: {}]
  %s9 = inlined_call_operand.vmem [shape: f32[1,144], index: 9, kind: input, shape index: {}]
  %s10 = inlined_call_operand.<no memory space> [shape: f32[1,1], index: 10, kind: input, shape index: {}]
  %s11 = inlined_call_operand.vmem [shape: f32[16,1], index: 11, kind: output, shape index: {}]
  %s12 = sld [smem:[#allocation0]]
  $region77: #{tpu_custom_call.1} parent=0
    _
  %s14 = ssub.s32 1, %s12
  %s15 = scalar_select 0, %s14, %s12
  %v16 = vstv %s10
  %17 = vst [vmem:[#allocation2] sm:$0x1] %v16
  loop: start=0, step=1, limit=4
  $region2: #{tpu_custom_call.1} parent=0 // loop_pre_header
    _
  $region3: #{tpu_custom_call.1} parent=0 // loop_header
    %s19 = sphi 0, %s23
    %p20 = scmp.ge.s32.totalorder %s19, 4
    %s29 = sphi 0, %s31
    %s32 = sphi 0, %s29
    %s33 = sphi 0, %s32
    %s49 = sphi 0, %s33
    %s55 = sphi 0, %s57
    %s58 = sphi 0, %s55
    %s59 = sphi 0, %s58
    %s75 = sphi 0, %s59
    %s79 = sphi 0, %s79
    %s81 = sphi 0, %s79
    %s82 = sphi 0, %s81
    %s96 = sphi 0, %s82
    %s100 = sphi 0, %s100
    %s102 = sphi 0, %s100
    %s103 = sphi 0, %s102
    %s117 = sphi 0, %s103
    %s121 = sphi 0, %s121
    %s123 = sphi 0, %s121
    %s124 = sphi 0, %s123
    %s138 = sphi 0, %s124
    %s142 = sphi 0, %s142
    %s144 = sphi 0, %s142
    %s145 = sphi 0, %s144
    %s159 = sphi 0, %s145
    %s163 = sphi 0, %s163
    %s165 = sphi 0, %s163
    %s166 = sphi 0, %s165
    %s180 = sphi 0, %s166
    %s184 = sphi 0, %s184
    %s186 = sphi 0, %s184
    %s187 = sphi 0, %s186
    %s201 = sphi 0, %s187
    %s205 = sphi 0, %s205
    %s207 = sphi 0, %s205
    %s208 = sphi 0, %s207
    %s222 = sphi 0, %s208
    %s226 = sphi 0, %s226
    %s228 = sphi 0, %s226
    %s229 = sphi 0, %s228
    %s243 = sphi 0, %s229
    %s247 = sphi 0, %s247
    %s249 = sphi 0, %s247
    %s250 = sphi 0, %s249
    %s264 = sphi 0, %s250
    %s270 = sphi 0, %s272
    %s273 = sphi 0, %s270
    %s274 = sphi 0, %s273
    %s290 = sphi 0, %s274
  $region4: #{tpu_custom_call.1} parent=0 // loop_header_branch
    %22 = sbr.rel (%p20) target = $region8
  $region5: #{tpu_custom_call.1} parent=0 // loop_body
    %s24 = ssub.s32 %s19, 1
    %s25 = ssub.s32 %s19, 2
    %s26 = sadd.s32 %s19, 1
    %s27 = ssub.s32 %s19, %s26
    %p28 = scmp.eq.s32.totalorder %s27, 0
    %s30 = sadd.s32 %s29, 1
    %s31 = scalar_select %p28, %s29, %s30
    %p34 = pneg %p28
    %p35 = scmp.eq.s32.totalorder %s19, 1
    %p36 = por %p34, %p35
    %p37 = scmp.ne.s32.totalorder %s29, %s32
    %p38 = scmp.eq.s32.totalorder %s19, 0
    %p39 = por %p37, %p38
    %p40 = scmp.ne.s32.totalorder %s29, %s32
    %p41 = scmp.eq.s32.totalorder %s24, 1
    %p42 = por %p40, %p41
    %p43 = scmp.ne.s32.totalorder %s32, %s33
    %p44 = scmp.eq.s32.totalorder %s24, 0
    %p45 = por %p43, %p44
    %p46 = scmp.ne.s32.totalorder %s32, %s33
    %p47 = scmp.eq.s32.totalorder %s25, 1
    %p48 = por %p46, %p47
    %p50 = scmp.ne.s32.totalorder %s33, %s49
    %p51 = scmp.eq.s32.totalorder %s25, 0
    %p52 = por %p50, %p51
    %s53 = ssub.s32 %s19, %s26
    %p54 = scmp.eq.s32.totalorder %s53, 0
    %s56 = sadd.s32 %s55, 1
    %s57 = scalar_select %p54, %s55, %s56
    %p60 = pneg %p54
    %p61 = scmp.eq.s32.totalorder %s19, 1
    %p62 = por %p60, %p61
    %p63 = scmp.ne.s32.totalorder %s55, %s58
    %p64 = scmp.eq.s32.totalorder %s19, 0
    %p65 = por %p63, %p64
    %p66 = scmp.ne.s32.totalorder %s55, %s58
    %p67 = scmp.eq.s32.totalorder %s24, 1
    %p68 = por %p66, %p67
    %p69 = scmp.ne.s32.totalorder %s58, %s59
    %p70 = scmp.eq.s32.totalorder %s24, 0
    %p71 = por %p69, %p70
    %p72 = scmp.ne.s32.totalorder %s58, %s59
    %p73 = scmp.eq.s32.totalorder %s25, 1
    %p74 = por %p72, %p73
    %p76 = scmp.ne.s32.totalorder %s59, %s75
    %p77 = scmp.eq.s32.totalorder %s25, 0
    %p78 = por %p76, %p77
    %s80 = sadd.s32 %s79, 1
    %p83 = scmp.eq.s32.totalorder %s19, 1
    %p84 = scmp.ne.s32.totalorder %s79, %s81
    %p85 = scmp.eq.s32.totalorder %s19, 0
    %p86 = por %p84, %p85
    %p87 = scmp.ne.s32.totalorder %s79, %s81
    %p88 = scmp.eq.s32.totalorder %s24, 1
    %p89 = por %p87, %p88
    %p90 = scmp.ne.s32.totalorder %s81, %s82
    %p91 = scmp.eq.s32.totalorder %s24, 0
    %p92 = por %p90, %p91
    %p93 = scmp.ne.s32.totalorder %s81, %s82
    %p94 = scmp.eq.s32.totalorder %s25, 1
    %p95 = por %p93, %p94
    %p97 = scmp.ne.s32.totalorder %s82, %s96
    %p98 = scmp.eq.s32.totalorder %s25, 0
    %p99 = por %p97, %p98
    %s101 = sadd.s32 %s100, 1
    %p104 = scmp.eq.s32.totalorder %s19, 1
    %p105 = scmp.ne.s32.totalorder %s100, %s102
    %p106 = scmp.eq.s32.totalorder %s19, 0
    %p107 = por %p105, %p106
    %p108 = scmp.ne.s32.totalorder %s100, %s102
    %p109 = scmp.eq.s32.totalorder %s24, 1
    %p110 = por %p108, %p109
    %p111 = scmp.ne.s32.totalorder %s102, %s103
    %p112 = scmp.eq.s32.totalorder %s24, 0
    %p113 = por %p111, %p112
    %p114 = scmp.ne.s32.totalorder %s102, %s103
    %p115 = scmp.eq.s32.totalorder %s25, 1
    %p116 = por %p114, %p115
    %p118 = scmp.ne.s32.totalorder %s103, %s117
    %p119 = scmp.eq.s32.totalorder %s25, 0
    %p120 = por %p118, %p119
    %s122 = sadd.s32 %s121, 1
    %p125 = scmp.eq.s32.totalorder %s19, 1
    %p126 = scmp.ne.s32.totalorder %s121, %s123
    %p127 = scmp.eq.s32.totalorder %s19, 0
    %p128 = por %p126, %p127
    %p129 = scmp.ne.s32.totalorder %s121, %s123
    %p130 = scmp.eq.s32.totalorder %s24, 1
    %p131 = por %p129, %p130
    %p132 = scmp.ne.s32.totalorder %s123, %s124
    %p133 = scmp.eq.s32.totalorder %s24, 0
    %p134 = por %p132, %p133
    %p135 = scmp.ne.s32.totalorder %s123, %s124
    %p136 = scmp.eq.s32.totalorder %s25, 1
    %p137 = por %p135, %p136
    %p139 = scmp.ne.s32.totalorder %s124, %s138
    %p140 = scmp.eq.s32.totalorder %s25, 0
    %p141 = por %p139, %p140
    %s143 = sadd.s32 %s142, 1
    %p146 = scmp.eq.s32.totalorder %s19, 1
    %p147 = scmp.ne.s32.totalorder %s142, %s144
    %p148 = scmp.eq.s32.totalorder %s19, 0
    %p149 = por %p147, %p148
    %p150 = scmp.ne.s32.totalorder %s142, %s144
    %p151 = scmp.eq.s32.totalorder %s24, 1
    %p152 = por %p150, %p151
    %p153 = scmp.ne.s32.totalorder %s144, %s145
    %p154 = scmp.eq.s32.totalorder %s24, 0
    %p155 = por %p153, %p154
    %p156 = scmp.ne.s32.totalorder %s144, %s145
    %p157 = scmp.eq.s32.totalorder %s25, 1
    %p158 = por %p156, %p157
    %p160 = scmp.ne.s32.totalorder %s145, %s159
    %p161 = scmp.eq.s32.totalorder %s25, 0
    %p162 = por %p160, %p161
    %s164 = sadd.s32 %s163, 1
    %p167 = scmp.eq.s32.totalorder %s19, 1
    %p168 = scmp.ne.s32.totalorder %s163, %s165
    %p169 = scmp.eq.s32.totalorder %s19, 0
    %p170 = por %p168, %p169
    %p171 = scmp.ne.s32.totalorder %s163, %s165
    %p172 = scmp.eq.s32.totalorder %s24, 1
    %p173 = por %p171, %p172
    %p174 = scmp.ne.s32.totalorder %s165, %s166
    %p175 = scmp.eq.s32.totalorder %s24, 0
    %p176 = por %p174, %p175
    %p177 = scmp.ne.s32.totalorder %s165, %s166
    %p178 = scmp.eq.s32.totalorder %s25, 1
    %p179 = por %p177, %p178
    %p181 = scmp.ne.s32.totalorder %s166, %s180
    %p182 = scmp.eq.s32.totalorder %s25, 0
    %p183 = por %p181, %p182
    %s185 = sadd.s32 %s184, 1
    %p188 = scmp.eq.s32.totalorder %s19, 1
    %p189 = scmp.ne.s32.totalorder %s184, %s186
    %p190 = scmp.eq.s32.totalorder %s19, 0
    %p191 = por %p189, %p190
    %p192 = scmp.ne.s32.totalorder %s184, %s186
    %p193 = scmp.eq.s32.totalorder %s24, 1
    %p194 = por %p192, %p193
    %p195 = scmp.ne.s32.totalorder %s186, %s187
    %p196 = scmp.eq.s32.totalorder %s24, 0
    %p197 = por %p195, %p196
    %p198 = scmp.ne.s32.totalorder %s186, %s187
    %p199 = scmp.eq.s32.totalorder %s25, 1
    %p200 = por %p198, %p199
    %p202 = scmp.ne.s32.totalorder %s187, %s201
    %p203 = scmp.eq.s32.totalorder %s25, 0
    %p204 = por %p202, %p203
    %s206 = sadd.s32 %s205, 1
    %p209 = scmp.eq.s32.totalorder %s19, 1
    %p210 = scmp.ne.s32.totalorder %s205, %s207
    %p211 = scmp.eq.s32.totalorder %s19, 0
    %p212 = por %p210, %p211
    %p213 = scmp.ne.s32.totalorder %s205, %s207
    %p214 = scmp.eq.s32.totalorder %s24, 1
    %p215 = por %p213, %p214
    %p216 = scmp.ne.s32.totalorder %s207, %s208
    %p217 = scmp.eq.s32.totalorder %s24, 0
    %p218 = por %p216, %p217
    %p219 = scmp.ne.s32.totalorder %s207, %s208
    %p220 = scmp.eq.s32.totalorder %s25, 1
    %p221 = por %p219, %p220
    %p223 = scmp.ne.s32.totalorder %s208, %s222
    %p224 = scmp.eq.s32.totalorder %s25, 0
    %p225 = por %p223, %p224
    %s227 = sadd.s32 %s226, 1
    %p230 = scmp.eq.s32.totalorder %s19, 1
    %p231 = scmp.ne.s32.totalorder %s226, %s228
    %p232 = scmp.eq.s32.totalorder %s19, 0
    %p233 = por %p231, %p232
    %p234 = scmp.ne.s32.totalorder %s226, %s228
    %p235 = scmp.eq.s32.totalorder %s24, 1
    %p236 = por %p234, %p235
    %p237 = scmp.ne.s32.totalorder %s228, %s229
    %p238 = scmp.eq.s32.totalorder %s24, 0
    %p239 = por %p237, %p238
    %p240 = scmp.ne.s32.totalorder %s228, %s229
    %p241 = scmp.eq.s32.totalorder %s25, 1
    %p242 = por %p240, %p241
    %p244 = scmp.ne.s32.totalorder %s229, %s243
    %p245 = scmp.eq.s32.totalorder %s25, 0
    %p246 = por %p244, %p245
    %s248 = sadd.s32 %s247, 1
    %p251 = scmp.eq.s32.totalorder %s19, 1
    %p252 = scmp.ne.s32.totalorder %s247, %s249
    %p253 = scmp.eq.s32.totalorder %s19, 0
    %p254 = por %p252, %p253
    %p255 = scmp.ne.s32.totalorder %s247, %s249
    %p256 = scmp.eq.s32.totalorder %s24, 1
    %p257 = por %p255, %p256
    %p258 = scmp.ne.s32.totalorder %s249, %s250
    %p259 = scmp.eq.s32.totalorder %s24, 0
    %p260 = por %p258, %p259
    %p261 = scmp.ne.s32.totalorder %s249, %s250
    %p262 = scmp.eq.s32.totalorder %s25, 1
    %p263 = por %p261, %p262
    %p265 = scmp.ne.s32.totalorder %s250, %s264
    %p266 = scmp.eq.s32.totalorder %s25, 0
    %p267 = por %p265, %p266
    %s268 = ssub.s32 %s19, %s26
    %p269 = scmp.eq.s32.totalorder %s268, 0
    %s271 = sadd.s32 %s270, 1
    %s272 = scalar_select %p269, %s270, %s271
    %p275 = pneg %p269
    %p276 = scmp.eq.s32.totalorder %s19, 1
    %p277 = por %p275, %p276
    %p278 = scmp.ne.s32.totalorder %s270, %s273
    %p279 = scmp.eq.s32.totalorder %s19, 0
    %p280 = por %p278, %p279
    %p281 = scmp.ne.s32.totalorder %s270, %s273
    %p282 = scmp.eq.s32.totalorder %s24, 1
    %p283 = por %p281, %p282
    %p284 = scmp.ne.s32.totalorder %s273, %s274
    %p285 = scmp.eq.s32.totalorder %s24, 0
    %p286 = por %p284, %p285
    %p287 = scmp.ne.s32.totalorder %s273, %s274
    %p288 = scmp.eq.s32.totalorder %s25, 1
    %p289 = por %p287, %p288
    %p291 = scmp.ne.s32.totalorder %s274, %s290
    %p292 = scmp.eq.s32.totalorder %s25, 0
    %p293 = por %p291, %p292
    %p294 = scmp.le.s32.totalorder 1, %s19
    %p295 = scmp.lt.s32.totalorder %s19, 3
    %p296 = pnand %p294, %p295
    %p297 = pneg %p296
    // Predicated region
    $region9: #{tpu_custom_call.1} parent=5 // pred_check
      _
    $region10: #{tpu_custom_call.1} parent=5 // pred_check_branch
      %299 = sbr.rel (%p296) target = $region12
    $region11: #{tpu_custom_call.1} parent=5 // pred_region
      %s300 = ssub.s32 %s19, 1
      // Predicated region
      $region13: #{tpu_custom_call.1} parent=11 // pred_check
        %p301 = pneg %p92
      $region14: #{tpu_custom_call.1} parent=11 // pred_check_branch
        %303 = sbr.rel (%p301) target = $region16
      $region15: #{tpu_custom_call.1} parent=11 // pred_region
        _
      $region16: #{tpu_custom_call.1} parent=11 // pred_fallthru
        _
      // Predicated region
      $region17: #{tpu_custom_call.1} parent=11 // pred_check
        %p304 = pneg %p113
      $region18: #{tpu_custom_call.1} parent=11 // pred_check_branch
        %306 = sbr.rel (%p304) target = $region20
      $region19: #{tpu_custom_call.1} parent=11 // pred_region
        _
      $region20: #{tpu_custom_call.1} parent=11 // pred_fallthru
        _
      // Predicated region
      $region21: #{tpu_custom_call.1} parent=11 // pred_check
        %p307 = pneg %p134
      $region22: #{tpu_custom_call.1} parent=11 // pred_check_branch
        %309 = sbr.rel (%p307) target = $region24
      $region23: #{tpu_custom_call.1} parent=11 // pred_region
        _
      $region24: #{tpu_custom_call.1} parent=11 // pred_fallthru
        _
      // Predicated region
      $region25: #{tpu_custom_call.1} parent=11 // pred_check
        %p310 = pneg %p155
      $region26: #{tpu_custom_call.1} parent=11 // pred_check_branch
        %312 = sbr.rel (%p310) target = $region28
      $region27: #{tpu_custom_call.1} parent=11 // pred_region
        _
      $region28: #{tpu_custom_call.1} parent=11 // pred_fallthru
        _
      // Predicated region
      $region29: #{tpu_custom_call.1} parent=11 // pred_check
        %p313 = pneg %p176
      $region30: #{tpu_custom_call.1} parent=11 // pred_check_branch
        %315 = sbr.rel (%p313) target = $region32
      $region31: #{tpu_custom_call.1} parent=11 // pred_region
        _
      $region32: #{tpu_custom_call.1} parent=11 // pred_fallthru
        _
      // Predicated region
      $region33: #{tpu_custom_call.1} parent=11 // pred_check
        %p316 = pneg %p197
      $region34: #{tpu_custom_call.1} parent=11 // pred_check_branch
        %318 = sbr.rel (%p316) target = $region36
      $region35: #{tpu_custom_call.1} parent=11 // pred_region
        _
      $region36: #{tpu_custom_call.1} parent=11 // pred_fallthru
        _
      // Predicated region
      $region37: #{tpu_custom_call.1} parent=11 // pred_check
        %p319 = pneg %p218
      $region38: #{tpu_custom_call.1} parent=11 // pred_check_branch
        %321 = sbr.rel (%p319) target = $region40
      $region39: #{tpu_custom_call.1} parent=11 // pred_region
        _
      $region40: #{tpu_custom_call.1} parent=11 // pred_fallthru
        _
      // Predicated region
      $region41: #{tpu_custom_call.1} parent=11 // pred_check
        %p322 = pneg %p239
      $region42: #{tpu_custom_call.1} parent=11 // pred_check_branch
        %324 = sbr.rel (%p322) target = $region44
      $region43: #{tpu_custom_call.1} parent=11 // pred_region
        _
      $region44: #{tpu_custom_call.1} parent=11 // pred_fallthru
        _
      // Predicated region
      $region45: #{tpu_custom_call.1} parent=11 // pred_check
        %p325 = pneg %p260
      $region46: #{tpu_custom_call.1} parent=11 // pred_check_branch
        %327 = sbr.rel (%p325) target = $region48
      $region47: #{tpu_custom_call.1} parent=11 // pred_region
        _
      $region48: #{tpu_custom_call.1} parent=11 // pred_fallthru
        _
    $region12: #{tpu_custom_call.1} parent=5 // pred_fallthru
      _
    %p328 = scmp.lt.s32.totalorder %s19, 2
    // Predicated region
    $region49: #{tpu_custom_call.1} parent=5 // pred_check
      %p329 = pneg %p328
    $region50: #{tpu_custom_call.1} parent=5 // pred_check_branch
      %331 = sbr.rel (%p329) target = $region52
    $region51: #{tpu_custom_call.1} parent=5 // pred_region
      // Predicated region
      $region53: #{tpu_custom_call.1} parent=51 // pred_check
        %p332 = pneg %p39
      $region54: #{tpu_custom_call.1} parent=51 // pred_check_branch
        %334 = sbr.rel (%p332) target = $region56
      $region55: #{tpu_custom_call.1} parent=51 // pred_region
        %p335 = scmp.lt.s32.totalorder %s19, 1
        %s336 = scalar_select %p335, %s19, 1
        %s337 = smul.addr %s336, 8
        %s338 = scalar_lea.vmem %s0, %s337
      $region56: #{tpu_custom_call.1} parent=51 // pred_fallthru
        _
      // Predicated region
      $region57: #{tpu_custom_call.1} parent=51 // pred_check
        %p339 = pneg %p65
      $region58: #{tpu_custom_call.1} parent=51 // pred_check_branch
        %341 = sbr.rel (%p339) target = $region60
      $region59: #{tpu_custom_call.1} parent=51 // pred_region
        %p342 = scmp.lt.s32.totalorder %s19, 1
        %s343 = scalar_select %p342, %s19, 1
        %s344 = smul.addr %s343, 8
        %s345 = scalar_lea.vmem %s1, %s344
      $region60: #{tpu_custom_call.1} parent=51 // pred_fallthru
        _
    $region52: #{tpu_custom_call.1} parent=5 // pred_fallthru
      _
    %p346 = scmp.le.s32.totalorder 1, %s19
    %p347 = scmp.lt.s32.totalorder %s19, 3
    %p348 = pnand %p346, %p347
    %p349 = pneg %p348
    // Predicated region
    $region61: #{tpu_custom_call.1} parent=5 // pred_check
      _
    $region62: #{tpu_custom_call.1} parent=5 // pred_check_branch
      %351 = sbr.rel (%p348) target = $region64
    $region63: #{tpu_custom_call.1} parent=5 // pred_region
      %s352 = ssub.s32 %s19, 1
      %p353 = scmp.lt.s32.totalorder %s24, 1
      %s354 = scalar_select %p353, %s24, 1
      %s355 = smul.addr %s354, 8
      %s356 = scalar_lea.vmem %s0, %s355
      %p357 = pneg %p45
      %p358 = pneg %p42
      %p359 = scmp.lt.s32.totalorder %s24, 1
      %s360 = scalar_select %p359, %s24, 1
      %s361 = smul.addr %s360, 8
      %s362 = scalar_lea.vmem %s1, %s361
      %p363 = pneg %p71
      %p364 = pneg %p68
      %p365 = pneg %p92
      %p366 = pneg %p89
      %p367 = pneg %p113
      %p368 = pneg %p110
      %p369 = pneg %p134
      %p370 = pneg %p131
      %p371 = pneg %p155
      %p372 = pneg %p152
      %p373 = pneg %p176
      %p374 = pneg %p173
      %p375 = pneg %p197
      %p376 = pneg %p194
      %p377 = pneg %p218
      %p378 = pneg %p215
      %p379 = pneg %p239
      %p380 = pneg %p236
      %p381 = pneg %p260
      %p382 = pneg %p257
      %p383 = pneg %p286
      %p384 = pneg %p283
      %p385 = scmp.lt.s32.totalorder %s24, 1
      %s386 = scalar_select %p385, %s24, 1
      %s387 = smul.addr %s386, 8
      %s388 = scalar_lea.vmem %s11, %s387
      %p389 = scmp.lt.s32.totalorder %s24, 1
      %s390 = scalar_select %p389, %s24, 1
      %s391 = smul.addr %s390, 8
      %s392 = scalar_lea.vmem %s0, %s391
      %p393 = scmp.lt.s32.totalorder %s24, 1
      %s394 = scalar_select %p393, %s24, 1
      %s395 = smul.addr %s394, 8
      %s396 = scalar_lea.vmem %s1, %s395
      %p397 = scmp.lt.s32.totalorder %s24, 1
      %s398 = scalar_select %p397, %s24, 1
      %s399 = smul.addr %s398, 8
      %s400 = scalar_lea.vmem %s11, %s399
      %v402 = vld [vmem:[%s392] sm:$0xff]
      %v403 = vpack.c.bf16 %v402, %v402
      %v404 = vld [vmem:[%s396] sm:$0xff]
      %v405 = vpack.c.bf16 %v404, %v404
      %v406 = vld [vmem:[%s2] sm:$0xf]
      %v407 = vld [vmem:[%s2 + $0x4] sm:$0xf]
      %v408 = vld [vmem:[%s2 + $0x8] sm:$0x7]
      %v409 = vld [vmem:[%s3] sm:$0x1]
      %v411 = vlaneseq
      %v412 = vshrl.u32 %v411, 7
      %v413 = vsub.s32 0, %v412
      %v414 = vrot.slane %v409, %v413
      %v419 = vunpack.c.l.b16 %v406
      %v420 = vunpack.c.l.b16 %v407
      %v421 = vunpack.c.l.b16 %v408
      %v422 = vpack.c.b16 %v420, %v419
      %v423 = vpack.c.b16 %v421, %v421
      %vm425 = vcmask 171008
      %v427 = vsel %vm425, %v405, 0
      %vm429 = vcmask 1041408
      %vm430 = vcmask 1042432
      %v431 = vsel %vm429, 4294967295, 65535
      %v432 = vsel %vm430, %v431, 0
      %v434 = vand.u32 %v423, %v432
      %436 = vmatprep.subr.bf16.mxu0 0
      %437 = vmatpush1.bf16.msra.mxu0 %v422
      %438 = vmatprep.subr.bf16.mxu0 0
      %439 = vmatpush1.bf16.msra.mxu0 %v434
      %440 = vmatprep.subr.bf16.mxu0 0
      %441 = vmatpush1.bf16.msra.mxu0 0
      %442 = vmatprep.subr.bf16.mxu0 0
      %443 = vmatpush1.bf16.msra.mxu0 0
      %444 = vmatprep.subr.bf16.mxu0 0
      %445 = vmatpush1.bf16.msra.mxu0 0
      %446 = vmatprep.subr.bf16.mxu0 0
      %447 = vmatpush1.bf16.msra.mxu0 0
      %448 = vmatprep.subr.bf16.mxu0 0
      %449 = vmatpush1.bf16.msra.mxu0 0
      %450 = vmatprep.subr.bf16.mxu0 0
      %451 = vmatpush1.bf16.msra.mxu0 0
      %452 = vmatprep.subr.bf16.mxu0 0
      %453 = vmatpush1.bf16.msra.mxu0 0
      %454 = vmatprep.subr.bf16.mxu0 0
      %455 = vmatpush1.bf16.msra.mxu0 0
      %456 = vmatprep.subr.bf16.mxu0 0
      %457 = vmatpush1.bf16.msra.mxu0 0
      %458 = vmatprep.subr.bf16.mxu0 0
      %459 = vmatpush1.bf16.msra.mxu0 0
      %460 = vmatprep.subr.bf16.mxu0 0
      %461 = vmatpush1.bf16.msra.mxu0 0
      %462 = vmatprep.subr.bf16.mxu0 0
      %463 = vmatpush1.bf16.msra.mxu0 0
      %464 = vmatprep.subr.bf16.mxu0 0
      %465 = vmatpush1.bf16.msra.mxu0 0
      %466 = vmatprep.subr.bf16.mxu0 0
      %467 = vmatpush1.bf16.msra.mxu0 0
      %468 = vmatprep.mubr.bf16.mxu0 0
      %469 = vmatmul.mubr.bf16.gmra.mrb[0].mxu0 %v427
      %v470 = vpop.f32.mrb[0].mxu0
      %v471 = vadd.f32 %v414, %v470
      %v472 = vpop.f32.mrb[0].mxu0
      %v473 = vpop.f32.mrb[0].mxu0
      %v474 = vpop.f32.mrb[0].mxu0
      %475 = vdwg.mxu0
      %v476 = vmax.f32 %v471, 0.0
      %v477 = vpack.c.bf16 %v476, %v476
      %v478 = vld [vmem:[%s4] sm:$0xf]
      %v479 = vld [vmem:[%s4 + $0x4] sm:$0xf]
      %v480 = vld [vmem:[%s4 + $0x8] sm:$0xf]
      %v481 = vld [vmem:[%s4 + $0xc] sm:$0xf]
      %v482 = vld [vmem:[%s4 + $0x10] sm:$0xf]
      %v483 = vld [vmem:[%s4 + $0x14] sm:$0xf]
      %v484 = vld [vmem:[%s4 + $0x18] sm:$0xf]
      %v485 = vld [vmem:[%s4 + $0x1c] sm:$0xf]
      %v486 = vld [vmem:[%s4 + $0x20] sm:$0xf]
      %v487 = vld [vmem:[%s4 + $0x24] sm:$0xf]
      %v488 = vld [vmem:[%s4 + $0x28] sm:$0xf]
      %v489 = vld [vmem:[%s4 + $0x2c] sm:$0xf]
      %v490 = vld [vmem:[%s4 + $0x30] sm:$0xf]
      %v491 = vld [vmem:[%s4 + $0x34] sm:$0xf]
      %v492 = vld [vmem:[%s4 + $0x38] sm:$0xf]
      %v493 = vld [vmem:[%s4 + $0x3c] sm:$0xf]
      %v494 = vld [vmem:[%s5] sm:$0x1]
      %v496 = vlaneseq
      %v497 = vshrl.u32 %v496, 7
      %v498 = vsub.s32 0, %v497
      %v499 = vrot.slane %v494, %v498
      %v517 = vunpack.c.l.b16 %v478
      %v518 = vunpack.c.l.b16 %v479
      %v519 = vunpack.c.l.b16 %v480
      %v520 = vunpack.c.l.b16 %v481
      %v521 = vunpack.c.l.b16 %v482
      %v522 = vunpack.c.l.b16 %v483
      %v523 = vunpack.c.l.b16 %v484
      %v524 = vunpack.c.l.b16 %v485
      %v525 = vunpack.c.l.b16 %v486
      %v526 = vunpack.c.l.b16 %v487
      %v527 = vunpack.c.l.b16 %v488
      %v528 = vunpack.c.l.b16 %v489
      %v529 = vunpack.c.l.b16 %v490
      %v530 = vunpack.c.l.b16 %v491
      %v531 = vunpack.c.l.b16 %v492
      %v532 = vunpack.c.l.b16 %v493
      %v533 = vpack.c.b16 %v518, %v517
      %v534 = vpack.c.b16 %v520, %v519
      %v535 = vpack.c.b16 %v522, %v521
      %v536 = vpack.c.b16 %v524, %v523
      %v537 = vpack.c.b16 %v526, %v525
      %v538 = vpack.c.b16 %v528, %v527
      %v539 = vpack.c.b16 %v530, %v529
      %v540 = vpack.c.b16 %v532, %v531
      %549 = vmatprep.subr.bf16.mxu0 0
      %550 = vmatpush1.bf16.msra.mxu0 %v533
      %551 = vmatprep.subr.bf16.mxu0 0
      %552 = vmatpush1.bf16.msra.mxu0 %v534
      %553 = vmatprep.subr.bf16.mxu0 0
      %554 = vmatpush1.bf16.msra.mxu0 %v535
      %555 = vmatprep.subr.bf16.mxu0 0
      %556 = vmatpush1.bf16.msra.mxu0 %v536
      %557 = vmatprep.subr.bf16.mxu0 0
      %558 = vmatpush1.bf16.msra.mxu0 %v537
      %559 = vmatprep.subr.bf16.mxu0 0
      %560 = vmatpush1.bf16.msra.mxu0 %v538
      %561 = vmatprep.subr.bf16.mxu0 0
      %562 = vmatpush1.bf16.msra.mxu0 %v539
      %563 = vmatprep.subr.bf16.mxu0 0
      %564 = vmatpush1.bf16.msra.mxu0 %v540
      %565 = vmatprep.subr.bf16.mxu0 0
      %566 = vmatpush1.bf16.msra.mxu0 0
      %567 = vmatprep.subr.bf16.mxu0 0
      %568 = vmatpush1.bf16.msra.mxu0 0
      %569 = vmatprep.subr.bf16.mxu0 0
      %570 = vmatpush1.bf16.msra.mxu0 0
      %571 = vmatprep.subr.bf16.mxu0 0
      %572 = vmatpush1.bf16.msra.mxu0 0
      %573 = vmatprep.subr.bf16.mxu0 0
      %574 = vmatpush1.bf16.msra.mxu0 0
      %575 = vmatprep.subr.bf16.mxu0 0
      %576 = vmatpush1.bf16.msra.mxu0 0
      %577 = vmatprep.subr.bf16.mxu0 0
      %578 = vmatpush1.bf16.msra.mxu0 0
      %579 = vmatprep.subr.bf16.mxu0 0
      %580 = vmatpush1.bf16.msra.mxu0 0
      %581 = vmatprep.mubr.bf16.mxu0 0
      %582 = vmatmul.mubr.bf16.gmra.mrb[0].mxu0 %v477
      %v583 = vpop.f32.mrb[0].mxu0
      %v584 = vadd.f32 %v499, %v583
      %v585 = vpop.f32.mrb[0].mxu0
      %v586 = vpop.f32.mrb[0].mxu0
      %v587 = vpop.f32.mrb[0].mxu0
      %588 = vdwg.mxu0
      %v589 = vld [vmem:[%s6] sm:$0xff]
      %v590 = vld [vmem:[%s6 + $0x8] sm:$0xff]
      %v591 = vpack.c.bf16 %v584, %v584
      %v592 = vld [vmem:[%s7] sm:$0xff]
      %v593 = vld [vmem:[%s7 + $0x8] sm:$0xff]
      %v594 = vld [vmem:[%s7 + $0x10] sm:$0xff]
      %v595 = vld [vmem:[%s7 + $0x18] sm:$0xff]
      %v596 = vld [vmem:[%s7 + $0x20] sm:$0xff]
      %v597 = vld [vmem:[%s7 + $0x28] sm:$0xff]
      %v598 = vld [vmem:[%s7 + $0x30] sm:$0xff]
      %v599 = vld [vmem:[%s7 + $0x38] sm:$0xff]
      %v600 = vld [vmem:[%s7 + $0x40] sm:$0xff]
      %v601 = vld [vmem:[%s7 + $0x48] sm:$0xff]
      %v602 = vld [vmem:[%s7 + $0x50] sm:$0xff]
      %v603 = vld [vmem:[%s7 + $0x58] sm:$0xff]
      %v604 = vld [vmem:[%s7 + $0x60] sm:$0xff]
      %v605 = vld [vmem:[%s7 + $0x68] sm:$0xff]
      %v606 = vld [vmem:[%s7 + $0x70] sm:$0xff]
      %v607 = vld [vmem:[%s7 + $0x78] sm:$0xff]
      %v624 = vunpack.c.l.b16 %v592
      %v625 = vunpack.c.h.b16 %v592
      %v626 = vunpack.c.l.b16 %v593
      %v627 = vunpack.c.h.b16 %v593
      %v628 = vunpack.c.l.b16 %v594
      %v629 = vunpack.c.h.b16 %v594
      %v630 = vunpack.c.l.b16 %v595
      %v631 = vunpack.c.h.b16 %v595
      %v632 = vunpack.c.l.b16 %v596
      %v633 = vunpack.c.h.b16 %v596
      %v634 = vunpack.c.l.b16 %v597
      %v635 = vunpack.c.h.b16 %v597
      %v636 = vunpack.c.l.b16 %v598
      %v637 = vunpack.c.h.b16 %v598
      %v638 = vunpack.c.l.b16 %v599
      %v639 = vunpack.c.h.b16 %v599
      %v640 = vunpack.c.l.b16 %v600
      %v641 = vunpack.c.h.b16 %v600
      %v642 = vunpack.c.l.b16 %v601
      %v643 = vunpack.c.h.b16 %v601
      %v644 = vunpack.c.l.b16 %v602
      %v645 = vunpack.c.h.b16 %v602
      %v646 = vunpack.c.l.b16 %v603
      %v647 = vunpack.c.h.b16 %v603
      %v648 = vunpack.c.l.b16 %v604
      %v649 = vunpack.c.h.b16 %v604
      %v650 = vunpack.c.l.b16 %v605
      %v651 = vunpack.c.h.b16 %v605
      %v652 = vunpack.c.l.b16 %v606
      %v653 = vunpack.c.h.b16 %v606
      %v654 = vunpack.c.l.b16 %v607
      %v655 = vunpack.c.h.b16 %v607
      %v656 = vpack.c.b16 %v626, %v624
      %v657 = vpack.c.b16 %v627, %v625
      %v658 = vpack.c.b16 %v630, %v628
      %v659 = vpack.c.b16 %v631, %v629
      %v660 = vpack.c.b16 %v634, %v632
      %v661 = vpack.c.b16 %v635, %v633
      %v662 = vpack.c.b16 %v638, %v636
      %v663 = vpack.c.b16 %v639, %v637
      %v664 = vpack.c.b16 %v642, %v640
      %v665 = vpack.c.b16 %v643, %v641
      %v666 = vpack.c.b16 %v646, %v644
      %v667 = vpack.c.b16 %v647, %v645
      %v668 = vpack.c.b16 %v650, %v648
      %v669 = vpack.c.b16 %v651, %v649
      %v670 = vpack.c.b16 %v654, %v652
      %v671 = vpack.c.b16 %v655, %v653
      %688 = vmatprep.subr.bf16.mxu0 %v657
      %689 = vmatpush1.bf16.msra.mxu0 %v656
      %690 = vmatprep.subr.bf16.mxu0 %v659
      %691 = vmatpush1.bf16.msra.mxu0 %v658
      %692 = vmatprep.subr.bf16.mxu0 %v661
      %693 = vmatpush1.bf16.msra.mxu0 %v660
      %694 = vmatprep.subr.bf16.mxu0 %v663
      %695 = vmatpush1.bf16.msra.mxu0 %v662
      %696 = vmatprep.subr.bf16.mxu0 %v665
      %697 = vmatpush1.bf16.msra.mxu0 %v664
      %698 = vmatprep.subr.bf16.mxu0 %v667
      %699 = vmatpush1.bf16.msra.mxu0 %v666
      %700 = vmatprep.subr.bf16.mxu0 %v669
      %701 = vmatpush1.bf16.msra.mxu0 %v668
      %702 = vmatprep.subr.bf16.mxu0 %v671
      %703 = vmatpush1.bf16.msra.mxu0 %v670
      %704 = vmatprep.subr.bf16.mxu0 0
      %705 = vmatpush1.bf16.msra.mxu0 0
      %706 = vmatprep.subr.bf16.mxu0 0
      %707 = vmatpush1.bf16.msra.mxu0 0
      %708 = vmatprep.subr.bf16.mxu0 0
      %709 = vmatpush1.bf16.msra.mxu0 0
      %710 = vmatprep.subr.bf16.mxu0 0
      %711 = vmatpush1.bf16.msra.mxu0 0
      %712 = vmatprep.subr.bf16.mxu0 0
      %713 = vmatpush1.bf16.msra.mxu0 0
      %714 = vmatprep.subr.bf16.mxu0 0
      %715 = vmatpush1.bf16.msra.mxu0 0
      %716 = vmatprep.subr.bf16.mxu0 0
      %717 = vmatpush1.bf16.msra.mxu0 0
      %718 = vmatprep.subr.bf16.mxu0 0
      %719 = vmatpush1.bf16.msra.mxu0 0
      %720 = vmatprep.mubr.bf16.mxu0 0
      %721 = vmatmul.mubr.bf16.gmra.mrb[0].mxu0 %v591
      %v722 = vpop.f32.mrb[0].mxu0
      %v723 = vadd.f32 0.0, %v722
      %v724 = vpop.f32.mrb[0].mxu0
      %v725 = vadd.f32 0.0, %v724
      %v726 = vpop.f32.mrb[0].mxu0
      %v727 = vpop.f32.mrb[0].mxu0
      %728 = vdwg.mxu0
      %v731 = vunpack.c.l.b16 %v589
      %v732 = vunpack.c.h.b16 %v589
      %v733 = vunpack.c.l.b16 %v590
      %v734 = vunpack.c.h.b16 %v590
      %v735 = vpack.c.b16 %v733, %v731
      %v736 = vpack.c.b16 %v734, %v732
      %vm739 = vcmask 130048
      %v741 = vsel %vm739, %v403, 0
      %743 = vmatprep.subr.bf16.mxu0 %v736
      %744 = vmatpush1.bf16.msra.mxu0 %v735
      %745 = vmatprep.subr.bf16.mxu0 0
      %746 = vmatpush1.bf16.msra.mxu0 0
      %747 = vmatprep.subr.bf16.mxu0 0
      %748 = vmatpush1.bf16.msra.mxu0 0
      %749 = vmatprep.subr.bf16.mxu0 0
      %750 = vmatpush1.bf16.msra.mxu0 0
      %751 = vmatprep.subr.bf16.mxu0 0
      %752 = vmatpush1.bf16.msra.mxu0 0
      %753 = vmatprep.subr.bf16.mxu0 0
      %754 = vmatpush1.bf16.msra.mxu0 0
      %755 = vmatprep.subr.bf16.mxu0 0
      %756 = vmatpush1.bf16.msra.mxu0 0
      %757 = vmatprep.subr.bf16.mxu0 0
      %758 = vmatpush1.bf16.msra.mxu0 0
      %759 = vmatprep.subr.bf16.mxu0 0
      %760 = vmatpush1.bf16.msra.mxu0 0
      %761 = vmatprep.subr.bf16.mxu0 0
      %762 = vmatpush1.bf16.msra.mxu0 0
      %763 = vmatprep.subr.bf16.mxu0 0
      %764 = vmatpush1.bf16.msra.mxu0 0
      %765 = vmatprep.subr.bf16.mxu0 0
      %766 = vmatpush1.bf16.msra.mxu0 0
      %767 = vmatprep.subr.bf16.mxu0 0
      %768 = vmatpush1.bf16.msra.mxu0 0
      %769 = vmatprep.subr.bf16.mxu0 0
      %770 = vmatpush1.bf16.msra.mxu0 0
      %771 = vmatprep.subr.bf16.mxu0 0
      %772 = vmatpush1.bf16.msra.mxu0 0
      %773 = vmatprep.subr.bf16.mxu0 0
      %774 = vmatpush1.bf16.msra.mxu0 0
      %775 = vmatprep.mubr.bf16.mxu0 0
      %776 = vmatmul.mubr.bf16.gmra.mrb[0].mxu0 %v741
      %v777 = vpop.f32.mrb[0].mxu0
      %v778 = vadd.f32 %v723, %v777
      %v779 = vpop.f32.mrb[0].mxu0
      %v780 = vadd.f32 %v725, %v779
      %v781 = vpop.f32.mrb[0].mxu0
      %v782 = vpop.f32.mrb[0].mxu0
      %783 = vdwg.mxu0
      %v784 = vld [vmem:[%s8] sm:$0x3]
      %v786 = vlaneseq
      %v787 = vshrl.u32 %v786, 7
      %v788 = vsub.s32 0, %v787
      %v789 = vrot.slane %v784, %v788
      %v790 = vlaneseq
      %v791 = vshrl.u32 %v790, 7
      %v792 = vsub.s32 1, %v791
      %v793 = vrot.slane %v784, %v792
      %v796 = vadd.f32 %v778, %v789
      %v797 = vadd.f32 %v780, %v793
      %v798 = vmax.f32 %v796, 0.0
      %v799 = vmax.f32 %v797, 0.0
      %v800 = vld [vmem:[%s9] sm:$0x3]
      %v802 = vlaneseq
      %v803 = vshrl.u32 %v802, 7
      %v804 = vsub.s32 0, %v803
      %v805 = vrot.slane %v800, %v804
      %v806 = vlaneseq
      %v807 = vshrl.u32 %v806, 7
      %v808 = vsub.s32 1, %v807
      %v809 = vrot.slane %v800, %v808
      %v812 = vmul.f32 %v798, %v805
      %v813 = vmul.f32 %v799, %v809
      %v814 = vsel %vm739, %v813, 0.0
      %v815 = vadd.f32 %v812, %v814
      %816 = vadd.xlane.f32.xlu0 %v815
      %v817 = vpop.xlane.xlu0 %816
      %v818 = vld [vmem:[#allocation2] sm:$0x1]
      %v820 = vlaneseq
      %v821 = vshrl.u32 %v820, 7
      %v822 = vsub.s32 0, %v821
      %v823 = vrot.slane %v818, %v822
      %v825 = vadd.f32 %v817, %v823
      %vm826 = vcmask 7168
      %827 = vst.msk [vmem:[%s400] sm:$0xff] %vm826, %v825
      %p828 = scmp.lt.s32.totalorder %s24, 1
      %s829 = scalar_select %p828, %s24, 1
      %s830 = smul.addr %s829, 8
      %s831 = scalar_lea.vmem %s11, %s830
      // Predicated region
      $region65: #{tpu_custom_call.1} parent=63 // pred_check
        %p832 = pneg %p283
      $region66: #{tpu_custom_call.1} parent=63 // pred_check_branch
        %834 = sbr.rel (%p832) target = $region68
      $region67: #{tpu_custom_call.1} parent=63 // pred_region
        _
      $region68: #{tpu_custom_call.1} parent=63 // pred_fallthru
        _
    $region64: #{tpu_custom_call.1} parent=5 // pred_fallthru
      _
    %p835 = scmp.le.s32.totalorder 2, %s19
    // Predicated region
    $region69: #{tpu_custom_call.1} parent=5 // pred_check
      %p836 = pneg %p835
    $region70: #{tpu_custom_call.1} parent=5 // pred_check_branch
      %838 = sbr.rel (%p836) target = $region72
    $region71: #{tpu_custom_call.1} parent=5 // pred_region
      %s839 = ssub.s32 %s19, 2
      // Predicated region
      $region73: #{tpu_custom_call.1} parent=71 // pred_check
        %p840 = pneg %p289
      $region74: #{tpu_custom_call.1} parent=71 // pred_check_branch
        %842 = sbr.rel (%p840) target = $region76
      $region75: #{tpu_custom_call.1} parent=71 // pred_region
        %p843 = scmp.lt.s32.totalorder %s25, 1
        %s844 = scalar_select %p843, %s25, 1
        %s845 = smul.addr %s844, 8
        %s846 = scalar_lea.vmem %s11, %s845
      $region76: #{tpu_custom_call.1} parent=71 // pred_fallthru
        _
    $region72: #{tpu_custom_call.1} parent=5 // pred_fallthru
      _
  $region6: #{tpu_custom_call.1} parent=0 // loop_footer
    %s23 = sadd.s32 1, %s19
  $region7: #{tpu_custom_call.1} parent=0 // loop_footer_branch
    %18 = sbr.rel target = $region3
  $region8: #{tpu_custom_call.1} parent=0 // loop_exit
    _

</llo_original>
